<compile_context>
chip_gen: v7x
topology: tpu7x:2x2x1
jax: 0.10.0
libtpu: 0.0.40
codegen_flags: <defaults>
</compile_context>

<pallas_src>
import math
import jax
import jax.numpy as jnp
from jax.experimental import pallas as pl
from jax.experimental.pallas import tpu as pltpu


# ----------------------------------------------------------------- utilities

def _round_up(x, m):
    return ((x + m - 1) // m) * m


def _pick_tile(dim, candidates):
    for c in candidates:
        if dim % c == 0:
            return c
    return dim


_VMEM_BUDGET_CACHE = None


def _vmem_budget():
    """Generation-aware scoped-VMEM budget (~60% of physical VMEM)."""
    global _VMEM_BUDGET_CACHE
    if _VMEM_BUDGET_CACHE is None:
        phys = 128 << 20                       # v5e / v6e default
        try:
            info = pltpu.get_tpu_info()
            cap = getattr(info, "vmem_capacity_bytes", None)
            if cap:
                phys = int(cap)                # 64 MiB on v7x
        except Exception:
            pass
        _VMEM_BUDGET_CACHE = max(16 << 20, int(phys * 3 // 5))
    return _VMEM_BUDGET_CACHE


def _vmem_limit(bytes_needed):
    # working set (double-buffered tiles) + headroom, clipped to the
    # generation-aware budget (never over-asks on v7x's 64 MiB VMEM).
    return int(min(max(bytes_needed + (2 << 20), 8 << 20), _vmem_budget()))


# ----------------------------------------------- weight / bias fusion kernels
# These run ONCE per parameter set (cached), O(N*K) elementwise work.

def _wT_only_kernel(we_ref, wT_ref):
    # num_weights == -1 : fused weight is just weight_eps; emit it as (K, N).
    wT_ref[...] = we_ref[...].T.astype(wT_ref.dtype)


def _fuse_eps_wT_kernel(w_ref, we_ref, b_ref, be_ref, wT_ref, bo_ref):
    # num_weights == 0 : W = weight + weight_eps ; b = bias + bias_eps.
    wT_ref[...] = (w_ref[...] + we_ref[...]).T.astype(wT_ref.dtype)

    @pl.when(pl.program_id(1) == 0)      # bias depends only on the N tile
    def _():
        bo_ref[...] = b_ref[...] + be_ref[...]


def _fuse_vec_wT_kernel(alphas_ref, w_ref, ws_ref, we_ref, b_ref, bs_ref,
                        be_ref, wT_ref, bo_ref):
    # num_weights > 0 : W = weight + sum_t a_t*weights[t] + weight_eps.
    nw = ws_ref.shape[0]
    w = w_ref[...] + we_ref[...]
    for t in range(nw):                   # nw is tiny -> static unroll
        w = w + alphas_ref[t] * ws_ref[t]          # alphas live in SMEM
    wT_ref[...] = w.T.astype(wT_ref.dtype)

    @pl.when(pl.program_id(1) == 0)
    def _():
        b = b_ref[...] + be_ref[...]
        for t in range(nw):
            b = b + alphas_ref[t] * bs_ref[t]
        bo_ref[...] = b


def _fusion_tile(Np, Kp, nw, out_itemsize):
    # square tiles keep the in-kernel transpose on the cleanest XLU path;
    # check the (nw+2)-wide working set against the generation-aware budget.
    budget = _vmem_budget()
    for tf in (256, 128):
        if Np % tf or Kp % tf:
            continue
        need = 2 * ((nw + 2) * tf * tf * 4) + 2 * (tf * tf * out_itemsize)
        if need + (4 << 20) <= budget:
            return tf
    return 128


def _fuse_weightT_eps_only(weight_eps, out_dtype):
    Np, Kp = weight_eps.shape
    osz = jnp.dtype(out_dtype).itemsize
    tf = _fusion_tile(Np, Kp, 0, osz)
    need = 2 * tf * tf * 4 + 2 * tf * tf * osz
    return pl.pallas_call(
        _wT_only_kernel,
        out_shape=jax.ShapeDtypeStruct((Kp, Np), out_dtype),
        grid_spec=pl.GridSpec(
            grid=(Np // tf, Kp // tf),
            in_specs=[pl.BlockSpec((tf, tf), lambda j, k: (j, k))],
            out_specs=pl.BlockSpec((tf, tf), lambda j, k: (k, j))),
        compiler_params=pltpu.CompilerParams(
            dimension_semantics=("parallel", "parallel"),
            vmem_limit_bytes=_vmem_limit(need)),
    )(weight_eps)


def _fuse_weightT_bias_eps(weight, weight_eps, bias2d, bias_eps2d, out_dtype):
    Np, Kp = weight.shape
    osz = jnp.dtype(out_dtype).itemsize
    tf = _fusion_tile(Np, Kp, 0, osz)
    need = (2 * (2 * tf * tf * 4 + 2 * tf * 4)
            + 2 * (tf * tf * osz + tf * 4))
    return pl.pallas_call(
        _fuse_eps_wT_kernel,
        out_shape=(jax.ShapeDtypeStruct((Kp, Np), out_dtype),
                   jax.ShapeDtypeStruct((1, Np), jnp.float32)),
        grid_spec=pl.GridSpec(
            grid=(Np // tf, Kp // tf),
            in_specs=[pl.BlockSpec((tf, tf), lambda j, k: (j, k)),
                      pl.BlockSpec((tf, tf), lambda j, k: (j, k)),
                      pl.BlockSpec((1, tf), lambda j, k: (0, j)),
                      pl.BlockSpec((1, tf), lambda j, k: (0, j))],
            out_specs=(pl.BlockSpec((tf, tf), lambda j, k: (k, j)),
                       pl.BlockSpec((1, tf), lambda j, k: (0, j)))),
        compiler_params=pltpu.CompilerParams(
            # K axis kept "arbitrary": the bias block is written only at k==0
            # and must stay resident on a single core.
            dimension_semantics=("parallel", "arbitrary"),
            vmem_limit_bytes=_vmem_limit(need)),
    )(weight, weight_eps, bias2d, bias_eps2d)


def _fuse_weightT_bias_vectors(alphas, weight, weights, weight_eps,
                               bias2d, biaes3d, bias_eps2d, out_dtype):
    nw, Np, Kp = weights.shape
    osz = jnp.dtype(out_dtype).itemsize
    tf = _fusion_tile(Np, Kp, nw, osz)
    need = (2 * ((nw + 2) * tf * tf * 4 + (nw + 2) * tf * 4)
            + 2 * (tf * tf * osz + tf * 4))
    return pl.pallas_call(
        _fuse_vec_wT_kernel,
        out_shape=(jax.ShapeDtypeStruct((Kp, Np), out_dtype),
                   jax.ShapeDtypeStruct((1, Np), jnp.float32)),
        grid_spec=pl.GridSpec(
            grid=(Np // tf, Kp // tf),
            in_specs=[pl.BlockSpec(memory_space=pltpu.MemorySpace.SMEM),   # alphas
                      pl.BlockSpec((tf, tf), lambda j, k: (j, k)),          # weight
                      pl.BlockSpec((nw, tf, tf), lambda j, k: (0, j, k)),   # weights
                      pl.BlockSpec((tf, tf), lambda j, k: (j, k)),          # weight_eps
                      pl.BlockSpec((1, tf), lambda j, k: (0, j)),           # bias
                      pl.BlockSpec((nw, 1, tf), lambda j, k: (0, 0, j)),    # biaes
                      pl.BlockSpec((1, tf), lambda j, k: (0, j))],          # bias_eps
            out_specs=(pl.BlockSpec((tf, tf), lambda j, k: (k, j)),
                       pl.BlockSpec((1, tf), lambda j, k: (0, j)))),
        compiler_params=pltpu.CompilerParams(
            dimension_semantics=("parallel", "arbitrary"),
            vmem_limit_bytes=_vmem_limit(need)),
    )(alphas, weight, weights, weight_eps, bias2d, biaes3d, bias_eps2d)


# ----------------------------------------------------- tiled matmul + bias

def _matmul_bias_f32out_kernel(x_ref, wt_ref, b_ref, o_ref):
    # f32 output: accumulate directly into the resident output block (the
    # output block index (i, j) is constant across k). No scratch, no copy.
    kk = pl.program_id(2)

    @pl.when(kk == 0)
    def _init():
        o_ref[...] = jnp.zeros_like(o_ref)

    o_ref[...] += jnp.dot(x_ref[...], wt_ref[...],
                          preferred_element_type=jnp.float32)

    @pl.when(kk == pl.num_programs(2) - 1)
    def _finalize():
        o_ref[...] = o_ref[...] + b_ref[...]


def _matmul_bias_scratch_kernel(x_ref, wt_ref, b_ref, o_ref, acc_ref):
    # Narrow output dtype (e.g. bf16): keep an f32 VMEM accumulator and cast
    # once on finalize.
    kk = pl.program_id(2)

    @pl.when(kk == 0)
    def _init():
        acc_ref[...] = jnp.zeros_like(acc_ref)

    acc_ref[...] += jnp.dot(x_ref[...], wt_ref[...],
                            preferred_element_type=jnp.float32)

    @pl.when(kk == pl.num_programs(2) - 1)
    def _finalize():
        o_ref[...] = (acc_ref[...] + b_ref[...]).astype(o_ref.dtype)


def _linear_wT(x2d, wT, bias2d, *, tm, out_dtype=jnp.float32, wT_buffers=2):
    Mp, Kp = x2d.shape
    Kp2, Np = wT.shape
    assert Kp == Kp2

    # Wide lane-dense tiles: prefer the largest multiple-of-128 divisor.
    tn = _pick_tile(Np, (512, 384, 256, 128))
    tk = _pick_tile(Kp, (512, 384, 256, 128))

    # v7x megacore occupancy: avoid a degenerate 1x1 "parallel" grid when the
    # N dimension can still be split into >= 2 lane-dense (>=128) tiles.
    if Mp // tm == 1 and Np // tn == 1 and Np >= 256:
        for c in (384, 256, 128):
            if Np % c == 0 and Np // c >= 2:
                tn = c
                break

    isz = jnp.dtype(x2d.dtype).itemsize
    osz = jnp.dtype(out_dtype).itemsize
    f32_out = jnp.dtype(out_dtype) == jnp.dtype(jnp.float32)
    need = (2 * tm * tk * isz + max(wT_buffers, 2) * tk * tn * isz
            + 2 * tn * 4 + 2 * tm * tn * osz
            + (0 if f32_out else tm * tn * 4))
    cost = pl.CostEstimate(
        flops=2 * Mp * Np * Kp,
        transcendentals=0,
        bytes_accessed=(Mp * Kp + Kp * Np) * isz + Np * 4 + Mp * Np * osz)

    if wT_buffers > 2:
        # Deeper pipeline on the weight stream (useful on v5e if the K-loop
        # DMA is exposed).
        wt_spec = pl.BlockSpec((tk, tn), lambda i, j, k: (k, j),
                               pipeline_mode=pl.Buffered(wT_buffers))
    else:
        wt_spec = pl.BlockSpec((tk, tn), lambda i, j, k: (k, j))

    kernel = _matmul_bias_f32out_kernel if f32_out else _matmul_bias_scratch_kernel
    scratch = [] if f32_out else [pltpu.VMEM((tm, tn), jnp.float32)]

    return pl.pallas_call(
        kernel,
        out_shape=jax.ShapeDtypeStruct((Mp, Np), out_dtype),
        grid_spec=pltpu.PrefetchScalarGridSpec(
            num_scalar_prefetch=0,
            grid=(Mp // tm, Np // tn, Kp // tk),
            in_specs=[pl.BlockSpec((tm, tk), lambda i, j, k: (i, k)),
                      wt_spec,
                      pl.BlockSpec((1, tn), lambda i, j, k: (0, j))],
            out_specs=pl.BlockSpec((tm, tn), lambda i, j, k: (i, j)),
            scratch_shapes=scratch),
        compiler_params=pltpu.CompilerParams(
            dimension_semantics=("parallel", "parallel", "arbitrary"),
            vmem_limit_bytes=_vmem_limit(need)),
        cost_estimate=cost,
    )(x2d, wT, bias2d)


# --------------------------------------------------- module-equivalent class

class FuseLinearPallas:
    def __init__(self, in_features, out_features, bias=True, num_weights=-1,
                 alpha=None, key=None, compute_dtype=jnp.float32,
                 out_dtype=jnp.float32, wT_buffers=2):
        if key is None:
            key = jax.random.PRNGKey(0)
        self.in_features = in_features
        self.out_features = out_features
        self._bias = bias
        self.num_weights = num_weights
        self.compute_dtype = compute_dtype
        self.out_dtype = out_dtype
        self.wT_buffers = wT_buffers
        self.Kp = _round_up(in_features, 128)
        self.Np = _round_up(out_features, 128)

        ks = jax.random.split(key, 7)
        bound = 1.0 / math.sqrt(in_features)  # kaiming_uniform(a=sqrt(5)) bound
        f32 = jnp.float32
        self.weight = jax.random.uniform(ks[0], (out_features, in_features),
                                         f32, -bound, bound)
        self.weight_eps = 0.01 * jax.random.normal(
            ks[1], (out_features, in_features), f32)
        if bias:
            self.bias = jax.random.uniform(ks[2], (out_features,), f32,
                                           -bound, bound)
            self.bias_eps = 0.01 * jax.random.normal(ks[3], (out_features,), f32)
        else:
            # bias=False -> F.linear(..., None); an all-zero bias is identical.
            self.bias = jnp.zeros((out_features,), f32)
            self.bias_eps = jnp.zeros((out_features,), f32)
        if num_weights > 0:
            self.weights = jax.random.uniform(
                ks[4], (num_weights, out_features, in_features), f32,
                -bound, bound)
            if bias:
                self.biaes = jax.random.uniform(
                    ks[5], (num_weights, out_features), f32, -bound, bound)
            else:
                self.biaes = jnp.zeros((num_weights, out_features), f32)
            self.alpha = (alpha if alpha is not None
                          else jax.random.normal(ks[6], (num_weights,), f32))

        # Pre-padded (lane/sublane aligned) parameter copies for the kernels.
        pn, pk = self.Np - out_features, self.Kp - in_features
        self._weight_p = jnp.pad(self.weight, ((0, pn), (0, pk)))
        self._weight_eps_p = jnp.pad(self.weight_eps, ((0, pn), (0, pk)))
        self._bias_p = jnp.pad(self.bias, (0, pn)).reshape(1, self.Np)
        self._bias_eps_p = jnp.pad(self.bias_eps, (0, pn)).reshape(1, self.Np)
        if num_weights > 0:
            self._weights_p = jnp.pad(self.weights, ((0, 0), (0, pn), (0, pk)))
            self._biaes_p = jnp.pad(self.biaes, ((0, 0), (0, pn))).reshape(
                num_weights, 1, self.Np)

        # Fused (K,N) weight + bias depend only on the parameters, not on x:
        # compute ONCE here (call refresh_fused() after any parameter update).
        self.refresh_fused()

    def refresh_fused(self):
        cd = self.compute_dtype
        if self.num_weights == -1:
            wT = _fuse_weightT_eps_only(self._weight_eps_p, cd)
            b2 = self._bias_eps_p
        elif self.num_weights == 0:
            wT, b2 = _fuse_weightT_bias_eps(
                self._weight_p, self._weight_eps_p,
                self._bias_p, self._bias_eps_p, cd)
        else:
            # tiny (num_weights,) softmax is plain-JAX parameter glue
            alphas = jax.nn.softmax(self.alpha, axis=0).astype(jnp.float32)
            wT, b2 = _fuse_weightT_bias_vectors(
                alphas, self._weight_p, self._weights_p, self._weight_eps_p,
                self._bias_p, self._biaes_p, self._bias_eps_p, cd)
        self._wT = jax.block_until_ready(wT)
        self._b2 = jax.block_until_ready(b2)

    @staticmethod
    def _pick_m_tile(M, compute_itemsize):
        if M >= 128:
            for c in (512, 384, 256, 128):   # prefer exact divisors (no padding)
                if M % c == 0:
                    return c
            if M >= 512:
                return 512
            if M >= 256:
                return 256
            return 128
        # small-M: sublane-aligned; bf16 packs 2 rows/sublane -> 16-aligned.
        align = 16 if compute_itemsize < 4 else 8
        return _round_up(M, align)

    def __call__(self, x):
        lead = x.shape[:-1]
        M = int(math.prod(lead)) if lead else 1
        K, N = self.in_features, self.out_features
        cd = self.compute_dtype

        tm = self._pick_m_tile(M, jnp.dtype(cd).itemsize)
        Mp = _round_up(M, tm)
        x2 = x.reshape(M, K).astype(cd)
        x2 = jnp.pad(x2, ((0, Mp - M), (0, self.Kp - K)))

        y = _linear_wT(x2, self._wT, self._b2, tm=tm,
                       out_dtype=self.out_dtype, wT_buffers=self.wT_buffers)
        return y[:M, :N].reshape(*lead, N)

    def reference(self, x):
        if self.num_weights == -1:
            w, b = self.weight_eps, self.bias_eps
        elif self.num_weights == 0:
            w = self.weight + self.weight_eps
            b = self.bias + self.bias_eps
        else:
            a = jax.nn.softmax(self.alpha, axis=0)
            w = (self.weight + jnp.sum(a[:, None, None] * self.weights, axis=0)
                 + self.weight_eps)
            b = (self.bias + jnp.sum(a[:, None] * self.biaes, axis=0)
                 + self.bias_eps)
        y = jnp.einsum("...k,nk->...n", x.astype(jnp.float32), w,
                       precision=jax.lax.Precision.HIGHEST)
        return y + b


if __name__ == "__main__":
    key = jax.random.PRNGKey(0)
    kx, kp, kx2, kp2 = jax.random.split(key, 4)
    ok = True

    # Small shapes matching the module's (*, H_in) contract: (2, 8, 32)->(2, 8, 64)
    in_f, out_f = 32, 64
    x = jax.random.normal(kx, (2, 8, in_f), jnp.float32)
    for nw in (-1, 0, 3):
        mod = FuseLinearPallas(in_f, out_f, bias=True, num_weights=nw, key=kp)
        out = jax.block_until_ready(mod(x))
        out_b = jax.block_until_ready(mod(x))   # second call reuses cached fusion
        ref = mod.reference(x)
        assert out.shape == (2, 8, out_f)
        ok &= bool(jnp.allclose(out, ref, atol=2e-2, rtol=2e-2))
        ok &= bool(jnp.allclose(out_b, ref, atol=2e-2, rtol=2e-2))

    # Larger shape exercising multi-tile (i, j, k) grid + K accumulation
    # (Np=384 now gets a full 384-wide lane-dense tile, tm=384 exact divisor).
    in_f2, out_f2 = 768, 384
    x2 = jax.random.normal(kx2, (3, 128, in_f2), jnp.float32)
    mod2 = FuseLinearPallas(in_f2, out_f2, bias=True, num_weights=2, key=kp2)
    out2 = jax.block_until_ready(mod2(x2))
    ref2 = mod2.reference(x2)
    assert out2.shape == (3, 128, out_f2)
    ok &= bool(jnp.allclose(out2, ref2, atol=2e-2, rtol=2e-2))

    # bf16 compute path (recommended on all generations incl. v5e),
    # f32 accumulation + f32 output -> looser tol (bf16 double-rounds inputs).
    mod3 = FuseLinearPallas(in_f2, out_f2, bias=True, num_weights=2, key=kp2,
                            compute_dtype=jnp.bfloat16)
    out3 = jax.block_until_ready(mod3(x2))
    ok &= bool(jnp.allclose(out3, ref2, atol=5e-2, rtol=5e-2))

    # bf16 output writeback path (scratch-accumulator kernel, halves HBM writes).
    mod4 = FuseLinearPallas(in_f2, out_f2, bias=True, num_weights=2, key=kp2,
                            compute_dtype=jnp.bfloat16, out_dtype=jnp.bfloat16)
    out4 = jax.block_until_ready(mod4(x2))
    ok &= bool(jnp.allclose(out4.astype(jnp.float32), ref2, atol=8e-2, rtol=8e-2))

    if ok:
        print("KERNEL_OK")
</pallas_src>

<mosaic_0001>
module attributes {stable_mosaic.version = 11 : i64} {
  func.func @_wT_only_kernel(%arg0: i32, %arg1: i32, %arg2: memref<128x128xf32, #tpu.memory_space<vmem>>, %arg3: memref<128x128xf32, #tpu.memory_space<vmem>>) attributes {dimension_semantics = [#tpu.dimension_semantics<parallel>, #tpu.dimension_semantics<parallel>], iteration_bounds = array<i64: 1, 1>, scalar_prefetch = 0 : i64, scratch_operands = 0 : i64, tpu.core_type = #tpu.core_type<tc>, window_params = [{transform_indices = @transform_0, window_bounds = array<i64: 128, 128>}, {transform_indices = @transform_1, window_bounds = array<i64: 128, 128>}]} {
    %c0 = arith.constant 0 : index
    %c0_0 = arith.constant 0 : index
    %0 = vector.load %arg2[%c0, %c0_0] : memref<128x128xf32, #tpu.memory_space<vmem>>, vector<128x128xf32>
    %1 = tpu.transpose %0, [1, 0] : vector<128x128xf32> -> vector<128x128xf32>
    %c0_1 = arith.constant 0 : index
    %c0_2 = arith.constant 0 : index
    %2 = vector.load %arg3[%c0_1, %c0_2] : memref<128x128xf32, #tpu.memory_space<vmem>>, vector<128x128xf32>
    tpu.vector_store %arg3[%c0_1, %c0_2], %1 {strides = array<i32>} : memref<128x128xf32, #tpu.memory_space<vmem>>, vector<128x128xf32>,
    return
  }
  func.func @transform_0(%arg0: i32, %arg1: i32) -> (i32, i32) {
    %c0_i32 = arith.constant 0 : i32
    return %arg0, %arg1 : i32, i32
  }
  func.func @transform_1(%arg0: i32, %arg1: i32) -> (i32, i32) {
    %c0_i32 = arith.constant 0 : i32
    return %arg1, %arg0 : i32, i32
  }
}

</mosaic_0001>

<llo_original>
// kernel: tpu_custom_call.1
$region0: #{tpu_custom_call.1}
  #allocation0 [shape = 'u32[]', space=smem, size = 0x4, offset = 0x4, fixed_abs, tag = 'smem constant byte address 0x4 - core index']
  #allocation1 [shape = 'u32[144,128]{1,0:T(1,128)}', space=vmem, size = 0x12000, scoped, tag = 'internal scratch']
  %s0 = inlined_call_operand.hbm [shape: f32[128,128], index: 0, kind: input, shape index: {}]
  %s1 = inlined_call_operand.hbm [shape: f32[128,128], index: 1, kind: output, shape index: {}]
  %s2 = sld [smem:[#allocation0]]
  $region18: #{tpu_custom_call.1} parent=0
    _
  %s4 = ssub.s32 1, %s2
  %s5 = scalar_select 0, %s4, %s2
  $region1: #{tpu_custom_call.1} parent=0
    #allocation2 [shape = 'u8[65536]{0}', space=vmem, size = 0x10000, scoped, tag = 'input window, operand 0, single buffered']
    #allocation3 [shape = 's32[1]{0}', space=sflag, size = 0x4, scoped, tag = 'scoped memory for tpu_custom_call.1']
    #allocation4 [shape = 's32[1]{0}', space=sflag, size = 0x4, scoped, tag = 'scoped memory for tpu_custom_call.1']
    #allocation5 [shape = 'u8[65536]{0}', space=vmem, size = 0x10000, scoped, tag = 'output window, operand 0, single buffered']
    %6 = vsyncpa [#allocation3], 0
    %7 = vsyncpa [#allocation4], 0
    // Predicated region
    $region2: #{tpu_custom_call.1} parent=1 // pred_check
      _
    $region3: #{tpu_custom_call.1} parent=1 // pred_check_branch
      %9 = sbr.rel (0) target = $region5
    $region4: #{tpu_custom_call.1} parent=1 // pred_region
      %s11 = ssub.s32 2048, 2048
      %12 = vsyncadd [#allocation3], %s11
      %s13 = sshll.u32 [#allocation2], 4
      %s14 = int_to_ptr.vmem [resolvable:$true] %s13
      %19 = dma.hbm_to_vmem [thread:$0]  %s0, 2048, %s14, [#allocation3], 128, 128, 8
    $region5: #{tpu_custom_call.1} parent=1 // pred_fallthru
      _
    // Predicated region
    $region6: #{tpu_custom_call.1} parent=1 // pred_check
      _
    $region7: #{tpu_custom_call.1} parent=1 // pred_check_branch
      %21 = sbr.rel (0) target = $region9
    $region8: #{tpu_custom_call.1} parent=1 // pred_region
      %22 = dma.done [#allocation3], 2048
    $region9: #{tpu_custom_call.1} parent=1 // pred_fallthru
      _
    %v23 = vld [vmem:[#allocation2] sm:$0xff]
    %v24 = vld [vmem:[#allocation2 + $0x8] sm:$0xff]
    %v25 = vld [vmem:[#allocation2 + $0x10] sm:$0xff]
    %v26 = vld [vmem:[#allocation2 + $0x18] sm:$0xff]
    %v27 = vld [vmem:[#allocation2 + $0x20] sm:$0xff]
    %v28 = vld [vmem:[#allocation2 + $0x28] sm:$0xff]
    %v29 = vld [vmem:[#allocation2 + $0x30] sm:$0xff]
    %v30 = vld [vmem:[#allocation2 + $0x38] sm:$0xff]
    %v31 = vld [vmem:[#allocation2 + $0x40] sm:$0xff]
    %v32 = vld [vmem:[#allocation2 + $0x48] sm:$0xff]
    %v33 = vld [vmem:[#allocation2 + $0x50] sm:$0xff]
    %v34 = vld [vmem:[#allocation2 + $0x58] sm:$0xff]
    %v35 = vld [vmem:[#allocation2 + $0x60] sm:$0xff]
    %v36 = vld [vmem:[#allocation2 + $0x68] sm:$0xff]
    %v37 = vld [vmem:[#allocation2 + $0x70] sm:$0xff]
    %v38 = vld [vmem:[#allocation2 + $0x78] sm:$0xff]
    %39 = vxpose.xlu0.b32.start [1/16] %v23, 128
    %40 = vxpose.xlu0.b32.cont [2/16] %v24, 128
    %41 = vxpose.xlu0.b32.cont [3/16] %v25, 128
    %42 = vxpose.xlu0.b32.cont [4/16] %v26, 128
    %43 = vxpose.xlu0.b32.cont [5/16] %v27, 128
    %44 = vxpose.xlu0.b32.cont [6/16] %v28, 128
    %45 = vxpose.xlu0.b32.cont [7/16] %v29, 128
    %46 = vxpose.xlu0.b32.cont [8/16] %v30, 128
    %47 = vxpose.xlu0.b32.cont [9/16] %v31, 128
    %48 = vxpose.xlu0.b32.cont [10/16] %v32, 128
    %49 = vxpose.xlu0.b32.cont [11/16] %v33, 128
    %50 = vxpose.xlu0.b32.cont [12/16] %v34, 128
    %51 = vxpose.xlu0.b32.cont [13/16] %v35, 128
    %52 = vxpose.xlu0.b32.cont [14/16] %v36, 128
    %53 = vxpose.xlu0.b32.cont [15/16] %v37, 128
    %54 = vxpose.xlu0.b32.end [16/16] %v38, 128
    %v55 = vpop.trf.xlu0
    %v56 = vpop.trf.xlu0
    %v57 = vpop.trf.xlu0
    %v58 = vpop.trf.xlu0
    %v59 = vpop.trf.xlu0
    %v60 = vpop.trf.xlu0
    %v61 = vpop.trf.xlu0
    %v62 = vpop.trf.xlu0
    %v63 = vpop.trf.xlu0
    %v64 = vpop.trf.xlu0
    %v65 = vpop.trf.xlu0
    %v66 = vpop.trf.xlu0
    %v67 = vpop.trf.xlu0
    %v68 = vpop.trf.xlu0
    %v69 = vpop.trf.xlu0
    %v70 = vpop.trf.xlu0
    %71 = vst [vmem:[#allocation5] sm:$0xff] %v55
    %72 = vst [vmem:[#allocation5 + $0x8] sm:$0xff] %v56
    %73 = vst [vmem:[#allocation5 + $0x10] sm:$0xff] %v57
    %74 = vst [vmem:[#allocation5 + $0x18] sm:$0xff] %v58
    %75 = vst [vmem:[#allocation5 + $0x20] sm:$0xff] %v59
    %76 = vst [vmem:[#allocation5 + $0x28] sm:$0xff] %v60
    %77 = vst [vmem:[#allocation5 + $0x30] sm:$0xff] %v61
    %78 = vst [vmem:[#allocation5 + $0x38] sm:$0xff] %v62
    %79 = vst [vmem:[#allocation5 + $0x40] sm:$0xff] %v63
    %80 = vst [vmem:[#allocation5 + $0x48] sm:$0xff] %v64
    %81 = vst [vmem:[#allocation5 + $0x50] sm:$0xff] %v65
    %82 = vst [vmem:[#allocation5 + $0x58] sm:$0xff] %v66
    %83 = vst [vmem:[#allocation5 + $0x60] sm:$0xff] %v67
    %84 = vst [vmem:[#allocation5 + $0x68] sm:$0xff] %v68
    %85 = vst [vmem:[#allocation5 + $0x70] sm:$0xff] %v69
    %86 = vst [vmem:[#allocation5 + $0x78] sm:$0xff] %v70
    // Predicated region
    $region10: #{tpu_custom_call.1} parent=1 // pred_check
      _
    $region11: #{tpu_custom_call.1} parent=1 // pred_check_branch
      %88 = sbr.rel (0) target = $region13
    $region12: #{tpu_custom_call.1} parent=1 // pred_region
      %s90 = ssub.s32 2048, 2048
      %91 = vsyncadd [#allocation4], %s90
      %s92 = sshll.u32 [#allocation5], 4
      %s93 = int_to_ptr.vmem [resolvable:$true] %s92
      %98 = dma.vmem_to_hbm [thread:$0]  %s93, 2048, %s1, [#allocation4], 128, 128, 8
    $region13: #{tpu_custom_call.1} parent=1 // pred_fallthru
      _
    // Predicated region
    $region14: #{tpu_custom_call.1} parent=1 // pred_check
      _
    $region15: #{tpu_custom_call.1} parent=1 // pred_check_branch
      %100 = sbr.rel (0) target = $region17
    $region16: #{tpu_custom_call.1} parent=1 // pred_region
      %101 = dma.done [#allocation4], 2048
    $region17: #{tpu_custom_call.1} parent=1 // pred_fallthru
      _
    %102 = vsyncpa [#allocation3], 1
    %103 = vsyncpa [#allocation4], 1

</llo_original>
